<compile_context>
chip_gen: v6e
topology: v6e:2x2x1
jax: 0.10.0
libtpu: 0.0.40
codegen_flags: <defaults>
</compile_context>

<pallas_src>
import functools

import jax
import jax.numpy as jnp
from jax.experimental import pallas as pl
from jax.experimental.pallas import tpu as pltpu


def _recip_f32(x):
    """EUP approx reciprocal + 2 Newton-Raphson steps (~f32 accurate, no VALU divide)."""
    inv = pl.reciprocal(x, approx=True)
    inv = inv * (2.0 - x * inv)
    inv = inv * (2.0 - x * inv)
    return inv


def _positions_mlp_kernel(pos_ref, mask_ref, w1_ref, b1_ref, w2_ref, b2_ref,
                          out_ref, *, eps: float, hidden_dim: int):
    # pos_ref : (3, Bblk, Np)   batch on sublanes, nodes on lanes
    # mask_ref: (Bblk, Np)
    # w1/b1/w2: (H,) f32 in SMEM ; b2: (1,) f32 in SMEM
    pos = pos_ref[...].astype(jnp.float32)          # (3, Bblk, Np)
    mask = mask_ref[...].astype(jnp.float32)        # (Bblk, Np)

    # ||pos||_2 over xyz: plain elementwise adds of the three planes (no XLU reduction).
    sq = pos * pos
    norm = jnp.sqrt(sq[0] + sq[1] + sq[2])          # (Bblk, Np)

    # Linear(1,H) -> ReLU -> Linear(H,1): unrolled scalar-broadcast accumulation on full
    # (8,128) vregs; 4 partial accumulators break the serial dependence over H.
    n_acc = 4
    accs = [jnp.zeros_like(norm) for _ in range(n_acc)]
    for h in range(hidden_dim):
        term = jnp.maximum(norm * w1_ref[h] + b1_ref[h], 0.0) * w2_ref[h]
        accs[h % n_acc] = accs[h % n_acc] + term
    new_norm = accs[0]
    for a in accs[1:]:
        new_norm = new_norm + a
    new_norm = new_norm + b2_ref[0]                 # (Bblk, Np)

    # Fold all per-node scalars once, then touch the xyz planes a single time.
    inv_norm = _recip_f32(norm + eps)               # (Bblk, Np)
    scale = new_norm * inv_norm * mask              # (Bblk, Np)
    new_pos = pos * scale                           # (3, Bblk, Np)

    # remove_mean_with_mask: masked mean over nodes (lane reduction per batch row).
    # NOTE: an all-zero node_mask row yields NaN/Inf, matching the PyTorch reference.
    n_nodes = jnp.sum(mask, axis=-1, keepdims=True)          # (Bblk, 1)
    inv_n = _recip_f32(n_nodes)
    mean = jnp.sum(new_pos, axis=-1, keepdims=True) * inv_n  # (3, Bblk, 1)
    out_ref[...] = (new_pos - mean * mask).astype(out_ref.dtype)


def _vmem_capacity_bytes():
    try:
        return int(pltpu.get_tpu_info().vmem_capacity_bytes)
    except Exception:
        return 64 * 1024 * 1024                     # conservative (v7x) fallback


def _tile_bytes_per_batch_row(n_pad):
    # pos (3 planes) + out (3 planes) + mask (1 plane), f32, double-buffered.
    # Exact for the (3, Bblk, Np)/(Bblk, Np) layout (no hidden sublane padding).
    return (3 + 3 + 1) * n_pad * 4 * 2


def _choose_batch_block(batch, n_pad, vmem_cap):
    """Pick the batch-block size (multiple of 8) and the padded batch extent."""
    budget = vmem_cap // 4                          # leave headroom for compiler scratch
    bytes_per_row = _tile_bytes_per_batch_row(n_pad)

    b_pad = ((batch + 7) // 8) * 8                  # batch rows land on 8 sublanes
    bblk = (budget // bytes_per_row) // 8 * 8
    bblk = max(8, min(b_pad, bblk))

    # v7x-like parts (<=64 MiB VMEM) have 2 TensorCores sharing the grid: keep >=4 grid
    # steps when the batch is large enough so the "parallel" axis load-balances.
    # On 1-TC chips (v5e/v6e) run the whole batch in one step if it fits.
    if vmem_cap <= 64 * 1024 * 1024 and b_pad >= 4 * 8:
        bblk = min(bblk, max(8, (b_pad // 4) // 8 * 8))

    # Pad the batch so the grid divides evenly (no divisor search, no tiny tiles).
    b_pad = ((b_pad + bblk - 1) // bblk) * bblk
    return bblk, b_pad


def positions_mlp(pos, node_mask, w1, b1, w2, b2, *, eps=1e-5):
    """pos: (B, N, 3); node_mask: (B, N) (0/1 or bool).
    w1: (H, 1), b1: (H,), w2: (1, H), b2: (1,)  -- PyTorch nn.Linear param shapes."""
    B, N, _ = pos.shape
    H = w1.shape[0]

    n_pad = ((N + 127) // 128) * 128
    vmem_cap = _vmem_capacity_bytes()
    bblk, b_pad = _choose_batch_block(B, n_pad, vmem_cap)

    # (3, B_pad, N_pad): xyz untiled, batch on sublanes, nodes lane-dense (128-multiple).
    pos_t = jnp.transpose(pos, (2, 0, 1))                           # (3, B, N)
    pos_t = jnp.pad(pos_t, ((0, 0), (0, b_pad - B), (0, n_pad - N)))

    # Padded node columns -> mask 0 (ignored by the masked mean).
    # Padded batch rows   -> mask 1 with pos 0, so they produce zeros instead of NaN.
    mask_t = jnp.pad(node_mask.astype(pos.dtype), ((0, 0), (0, n_pad - N)))
    mask_t = jnp.pad(mask_t, ((0, b_pad - B), (0, 0)), constant_values=1.0)

    # MLP params -> flat f32 vectors for SMEM scalar reads inside the kernel.
    w1_s = w1.reshape(H).astype(jnp.float32)
    b1_s = b1.reshape(H).astype(jnp.float32)
    w2_s = w2.reshape(H).astype(jnp.float32)
    b2_s = b2.reshape(1).astype(jnp.float32)

    tile_bytes = _tile_bytes_per_batch_row(n_pad) * bblk
    vmem_limit = int(min(max(vmem_cap - (8 << 20), 32 << 20),
                         max(32 << 20, tile_bytes + (4 << 20))))

    kernel = functools.partial(_positions_mlp_kernel, eps=eps, hidden_dim=H)
    smem_spec = pl.BlockSpec(memory_space=pltpu.MemorySpace.SMEM)

    out_t = pl.pallas_call(
        kernel,
        out_shape=jax.ShapeDtypeStruct((3, b_pad, n_pad), pos.dtype),
        grid_spec=pltpu.PrefetchScalarGridSpec(
            num_scalar_prefetch=0,
            grid=(b_pad // bblk,),
            in_specs=[
                pl.BlockSpec((3, bblk, n_pad), lambda b: (0, b, 0)),  # pos
                pl.BlockSpec((bblk, n_pad), lambda b: (b, 0)),        # node_mask
                smem_spec,   # w1
                smem_spec,   # b1
                smem_spec,   # w2
                smem_spec,   # b2
            ],
            out_specs=pl.BlockSpec((3, bblk, n_pad), lambda b: (0, b, 0)),
        ),
        compiler_params=pltpu.CompilerParams(
            dimension_semantics=("parallel",),
            vmem_limit_bytes=vmem_limit),
    )(pos_t, mask_t, w1_s, b1_s, w2_s, b2_s)

    # Back to the module's (B, N, 3) layout.
    return jnp.transpose(out_t[:, :B, :N], (1, 2, 0))


def _reference(pos, node_mask, w1, b1, w2, b2, eps=1e-5):
    """Pure-JAX reference mirroring the PyTorch forward."""
    norm = jnp.linalg.norm(pos, axis=-1, keepdims=True)              # (B, N, 1)
    h = jax.nn.relu(norm @ w1.T + b1)                                # (B, N, H)
    new_norm = h @ w2.T + b2                                         # (B, N, 1)
    new_pos = pos * new_norm / (norm + eps)
    new_pos = new_pos * node_mask[..., None]
    n = jnp.sum(node_mask, axis=1, keepdims=True)[..., None]         # (B, 1, 1)
    mean = jnp.sum(new_pos, axis=1, keepdims=True) / n               # (B, 1, 3)
    return new_pos - mean * node_mask[..., None]


if __name__ == "__main__":
    key = jax.random.PRNGKey(0)
    B, N, H = 2, 8, 32

    k_pos, k_mask, k_w1, k_b1, k_w2, k_b2 = jax.random.split(key, 6)

    pos = jax.random.normal(k_pos, (B, N, 3), dtype=jnp.float32)
    # binary node mask with at least one active node per batch
    node_mask = (jax.random.uniform(k_mask, (B, N)) > 0.3).astype(jnp.float32)
    node_mask = node_mask.at[:, 0].set(1.0)

    # PyTorch Linear param shapes: weight (out, in), bias (out,)
    w1 = jax.random.normal(k_w1, (H, 1), dtype=jnp.float32) * 0.5
    b1 = jax.random.normal(k_b1, (H,), dtype=jnp.float32) * 0.1
    w2 = jax.random.normal(k_w2, (1, H), dtype=jnp.float32) * 0.5
    b2 = jax.random.normal(k_b2, (1,), dtype=jnp.float32) * 0.1

    out = positions_mlp(pos, node_mask, w1, b1, w2, b2, eps=1e-5)
    out = jax.block_until_ready(out)

    ref = _reference(pos, node_mask, w1, b1, w2, b2, eps=1e-5)
    assert out.shape == (B, N, 3)
    assert jnp.allclose(out, ref, atol=2e-5, rtol=2e-5), "mismatch vs JAX reference"

    print("KERNEL_OK")
</pallas_src>

<mosaic_0001>
module attributes {stable_mosaic.version = 11 : i64} {
  func.func @_positions_mlp_kernel(%arg0: i32, %arg1: memref<3x8x128xf32, #tpu.memory_space<vmem>>, %arg2: memref<8x128xf32, #tpu.memory_space<vmem>>, %arg3: memref<32xf32, #tpu.memory_space<smem>>, %arg4: memref<32xf32, #tpu.memory_space<smem>>, %arg5: memref<32xf32, #tpu.memory_space<smem>>, %arg6: memref<1xf32, #tpu.memory_space<smem>>, %arg7: memref<3x8x128xf32, #tpu.memory_space<vmem>>) attributes {dimension_semantics = [#tpu.dimension_semantics<parallel>], iteration_bounds = array<i64: 1>, scalar_prefetch = 0 : i64, scratch_operands = 0 : i64, tpu.core_type = #tpu.core_type<tc>, window_params = [{transform_indices = @transform_0, window_bounds = array<i64: 3, 8, 128>}, {transform_indices = @transform_1, window_bounds = array<i64: 8, 128>}, {transform_indices = @transform_2, window_bounds = array<i64: 32>}, {transform_indices = @transform_3, window_bounds = array<i64: 32>}, {transform_indices = @transform_4, window_bounds = array<i64: 32>}, {transform_indices = @transform_5, window_bounds = array<i64: 1>}, {transform_indices = @transform_6, window_bounds = array<i64: 3, 8, 128>}]} {
    %c0 = arith.constant 0 : index
    %c0_0 = arith.constant 0 : index
    %c0_1 = arith.constant 0 : index
    %0 = vector.load %arg1[%c0, %c0_0, %c0_1] : memref<3x8x128xf32, #tpu.memory_space<vmem>>, vector<3x8x128xf32>
    %c0_2 = arith.constant 0 : index
    %c0_3 = arith.constant 0 : index
    %1 = vector.load %arg2[%c0_2, %c0_3] : memref<8x128xf32, #tpu.memory_space<vmem>>, vector<8x128xf32>
    %2 = arith.mulf %0, %0 : vector<3x8x128xf32>
    %3 = vector.extract_strided_slice %2 {offsets = [0, 0, 0], sizes = [1, 8, 128], strides = [1, 1, 1]} : vector<3x8x128xf32> to vector<1x8x128xf32>
    %4 = vector.shape_cast %3 : vector<1x8x128xf32> to vector<8x128xf32>
    %5 = vector.extract_strided_slice %2 {offsets = [1, 0, 0], sizes = [1, 8, 128], strides = [1, 1, 1]} : vector<3x8x128xf32> to vector<1x8x128xf32>
    %6 = vector.shape_cast %5 : vector<1x8x128xf32> to vector<8x128xf32>
    %7 = arith.addf %4, %6 : vector<8x128xf32>
    %8 = vector.extract_strided_slice %2 {offsets = [2, 0, 0], sizes = [1, 8, 128], strides = [1, 1, 1]} : vector<3x8x128xf32> to vector<1x8x128xf32>
    %9 = vector.shape_cast %8 : vector<1x8x128xf32> to vector<8x128xf32>
    %10 = arith.addf %7, %9 : vector<8x128xf32>
    %11 = math.sqrt %10 : vector<8x128xf32>
    %cst = arith.constant 0.000000e+00 : f32
    %12 = vector.broadcast %cst : f32 to vector<8x128xf32>
    %cst_4 = arith.constant 0.000000e+00 : f32
    %13 = vector.broadcast %cst_4 : f32 to vector<8x128xf32>
    %cst_5 = arith.constant 0.000000e+00 : f32
    %14 = vector.broadcast %cst_5 : f32 to vector<8x128xf32>
    %cst_6 = arith.constant 0.000000e+00 : f32
    %15 = vector.broadcast %cst_6 : f32 to vector<8x128xf32>
    %c0_7 = arith.constant 0 : index
    %16 = memref.load %arg3[%c0_7] : memref<32xf32, #tpu.memory_space<smem>>
    %17 = vector.broadcast %16 : f32 to vector<8x128xf32>
    %18 = arith.mulf %11, %17 : vector<8x128xf32>
    %c0_8 = arith.constant 0 : index
    %19 = memref.load %arg4[%c0_8] : memref<32xf32, #tpu.memory_space<smem>>
    %20 = vector.broadcast %19 : f32 to vector<8x128xf32>
    %21 = arith.addf %18, %20 : vector<8x128xf32>
    %cst_9 = arith.constant 0.000000e+00 : f32
    %22 = vector.broadcast %cst_9 : f32 to vector<8x128xf32>
    %23 = arith.maximumf %21, %22 : vector<8x128xf32>
    %c0_10 = arith.constant 0 : index
    %24 = memref.load %arg5[%c0_10] : memref<32xf32, #tpu.memory_space<smem>>
    %25 = vector.broadcast %24 : f32 to vector<8x128xf32>
    %26 = arith.mulf %23, %25 : vector<8x128xf32>
    %27 = arith.addf %12, %26 : vector<8x128xf32>
    %c1 = arith.constant 1 : index
    %28 = memref.load %arg3[%c1] : memref<32xf32, #tpu.memory_space<smem>>
    %29 = vector.broadcast %28 : f32 to vector<8x128xf32>
    %30 = arith.mulf %11, %29 : vector<8x128xf32>
    %c1_11 = arith.constant 1 : index
    %31 = memref.load %arg4[%c1_11] : memref<32xf32, #tpu.memory_space<smem>>
    %32 = vector.broadcast %31 : f32 to vector<8x128xf32>
    %33 = arith.addf %30, %32 : vector<8x128xf32>
    %cst_12 = arith.constant 0.000000e+00 : f32
    %34 = vector.broadcast %cst_12 : f32 to vector<8x128xf32>
    %35 = arith.maximumf %33, %34 : vector<8x128xf32>
    %c1_13 = arith.constant 1 : index
    %36 = memref.load %arg5[%c1_13] : memref<32xf32, #tpu.memory_space<smem>>
    %37 = vector.broadcast %36 : f32 to vector<8x128xf32>
    %38 = arith.mulf %35, %37 : vector<8x128xf32>
    %39 = arith.addf %13, %38 : vector<8x128xf32>
    %c2 = arith.constant 2 : index
    %40 = memref.load %arg3[%c2] : memref<32xf32, #tpu.memory_space<smem>>
    %41 = vector.broadcast %40 : f32 to vector<8x128xf32>
    %42 = arith.mulf %11, %41 : vector<8x128xf32>
    %c2_14 = arith.constant 2 : index
    %43 = memref.load %arg4[%c2_14] : memref<32xf32, #tpu.memory_space<smem>>
    %44 = vector.broadcast %43 : f32 to vector<8x128xf32>
    %45 = arith.addf %42, %44 : vector<8x128xf32>
    %cst_15 = arith.constant 0.000000e+00 : f32
    %46 = vector.broadcast %cst_15 : f32 to vector<8x128xf32>
    %47 = arith.maximumf %45, %46 : vector<8x128xf32>
    %c2_16 = arith.constant 2 : index
    %48 = memref.load %arg5[%c2_16] : memref<32xf32, #tpu.memory_space<smem>>
    %49 = vector.broadcast %48 : f32 to vector<8x128xf32>
    %50 = arith.mulf %47, %49 : vector<8x128xf32>
    %51 = arith.addf %14, %50 : vector<8x128xf32>
    %c3 = arith.constant 3 : index
    %52 = memref.load %arg3[%c3] : memref<32xf32, #tpu.memory_space<smem>>
    %53 = vector.broadcast %52 : f32 to vector<8x128xf32>
    %54 = arith.mulf %11, %53 : vector<8x128xf32>
    %c3_17 = arith.constant 3 : index
    %55 = memref.load %arg4[%c3_17] : memref<32xf32, #tpu.memory_space<smem>>
    %56 = vector.broadcast %55 : f32 to vector<8x128xf32>
    %57 = arith.addf %54, %56 : vector<8x128xf32>
    %cst_18 = arith.constant 0.000000e+00 : f32
    %58 = vector.broadcast %cst_18 : f32 to vector<8x128xf32>
    %59 = arith.maximumf %57, %58 : vector<8x128xf32>
    %c3_19 = arith.constant 3 : index
    %60 = memref.load %arg5[%c3_19] : memref<32xf32, #tpu.memory_space<smem>>
    %61 = vector.broadcast %60 : f32 to vector<8x128xf32>
    %62 = arith.mulf %59, %61 : vector<8x128xf32>
    %63 = arith.addf %15, %62 : vector<8x128xf32>
    %c4 = arith.constant 4 : index
    %64 = memref.load %arg3[%c4] : memref<32xf32, #tpu.memory_space<smem>>
    %65 = vector.broadcast %64 : f32 to vector<8x128xf32>
    %66 = arith.mulf %11, %65 : vector<8x128xf32>
    %c4_20 = arith.constant 4 : index
    %67 = memref.load %arg4[%c4_20] : memref<32xf32, #tpu.memory_space<smem>>
    %68 = vector.broadcast %67 : f32 to vector<8x128xf32>
    %69 = arith.addf %66, %68 : vector<8x128xf32>
    %cst_21 = arith.constant 0.000000e+00 : f32
    %70 = vector.broadcast %cst_21 : f32 to vector<8x128xf32>
    %71 = arith.maximumf %69, %70 : vector<8x128xf32>
    %c4_22 = arith.constant 4 : index
    %72 = memref.load %arg5[%c4_22] : memref<32xf32, #tpu.memory_space<smem>>
    %73 = vector.broadcast %72 : f32 to vector<8x128xf32>
    %74 = arith.mulf %71, %73 : vector<8x128xf32>
    %75 = arith.addf %27, %74 : vector<8x128xf32>
    %c5 = arith.constant 5 : index
    %76 = memref.load %arg3[%c5] : memref<32xf32, #tpu.memory_space<smem>>
    %77 = vector.broadcast %76 : f32 to vector<8x128xf32>
    %78 = arith.mulf %11, %77 : vector<8x128xf32>
    %c5_23 = arith.constant 5 : index
    %79 = memref.load %arg4[%c5_23] : memref<32xf32, #tpu.memory_space<smem>>
    %80 = vector.broadcast %79 : f32 to vector<8x128xf32>
    %81 = arith.addf %78, %80 : vector<8x128xf32>
    %cst_24 = arith.constant 0.000000e+00 : f32
    %82 = vector.broadcast %cst_24 : f32 to vector<8x128xf32>
    %83 = arith.maximumf %81, %82 : vector<8x128xf32>
    %c5_25 = arith.constant 5 : index
    %84 = memref.load %arg5[%c5_25] : memref<32xf32, #tpu.memory_space<smem>>
    %85 = vector.broadcast %84 : f32 to vector<8x128xf32>
    %86 = arith.mulf %83, %85 : vector<8x128xf32>
    %87 = arith.addf %39, %86 : vector<8x128xf32>
    %c6 = arith.constant 6 : index
    %88 = memref.load %arg3[%c6] : memref<32xf32, #tpu.memory_space<smem>>
    %89 = vector.broadcast %88 : f32 to vector<8x128xf32>
    %90 = arith.mulf %11, %89 : vector<8x128xf32>
    %c6_26 = arith.constant 6 : index
    %91 = memref.load %arg4[%c6_26] : memref<32xf32, #tpu.memory_space<smem>>
    %92 = vector.broadcast %91 : f32 to vector<8x128xf32>
    %93 = arith.addf %90, %92 : vector<8x128xf32>
    %cst_27 = arith.constant 0.000000e+00 : f32
    %94 = vector.broadcast %cst_27 : f32 to vector<8x128xf32>
    %95 = arith.maximumf %93, %94 : vector<8x128xf32>
    %c6_28 = arith.constant 6 : index
    %96 = memref.load %arg5[%c6_28] : memref<32xf32, #tpu.memory_space<smem>>
    %97 = vector.broadcast %96 : f32 to vector<8x128xf32>
    %98 = arith.mulf %95, %97 : vector<8x128xf32>
    %99 = arith.addf %51, %98 : vector<8x128xf32>
    %c7 = arith.constant 7 : index
    %100 = memref.load %arg3[%c7] : memref<32xf32, #tpu.memory_space<smem>>
    %101 = vector.broadcast %100 : f32 to vector<8x128xf32>
    %102 = arith.mulf %11, %101 : vector<8x128xf32>
    %c7_29 = arith.constant 7 : index
    %103 = memref.load %arg4[%c7_29] : memref<32xf32, #tpu.memory_space<smem>>
    %104 = vector.broadcast %103 : f32 to vector<8x128xf32>
    %105 = arith.addf %102, %104 : vector<8x128xf32>
    %cst_30 = arith.constant 0.000000e+00 : f32
    %106 = vector.broadcast %cst_30 : f32 to vector<8x128xf32>
    %107 = arith.maximumf %105, %106 : vector<8x128xf32>
    %c7_31 = arith.constant 7 : index
    %108 = memref.load %arg5[%c7_31] : memref<32xf32, #tpu.memory_space<smem>>
    %109 = vector.broadcast %108 : f32 to vector<8x128xf32>
    %110 = arith.mulf %107, %109 : vector<8x128xf32>
    %111 = arith.addf %63, %110 : vector<8x128xf32>
    %c8 = arith.constant 8 : index
    %112 = memref.load %arg3[%c8] : memref<32xf32, #tpu.memory_space<smem>>
    %113 = vector.broadcast %112 : f32 to vector<8x128xf32>
    %114 = arith.mulf %11, %113 : vector<8x128xf32>
    %c8_32 = arith.constant 8 : index
    %115 = memref.load %arg4[%c8_32] : memref<32xf32, #tpu.memory_space<smem>>
    %116 = vector.broadcast %115 : f32 to vector<8x128xf32>
    %117 = arith.addf %114, %116 : vector<8x128xf32>
    %cst_33 = arith.constant 0.000000e+00 : f32
    %118 = vector.broadcast %cst_33 : f32 to vector<8x128xf32>
    %119 = arith.maximumf %117, %118 : vector<8x128xf32>
    %c8_34 = arith.constant 8 : index
    %120 = memref.load %arg5[%c8_34] : memref<32xf32, #tpu.memory_space<smem>>
    %121 = vector.broadcast %120 : f32 to vector<8x128xf32>
    %122 = arith.mulf %119, %121 : vector<8x128xf32>
    %123 = arith.addf %75, %122 : vector<8x128xf32>
    %c9 = arith.constant 9 : index
    %124 = memref.load %arg3[%c9] : memref<32xf32, #tpu.memory_space<smem>>
    %125 = vector.broadcast %124 : f32 to vector<8x128xf32>
    %126 = arith.mulf %11, %125 : vector<8x128xf32>
    %c9_35 = arith.constant 9 : index
    %127 = memref.load %arg4[%c9_35] : memref<32xf32, #tpu.memory_space<smem>>
    %128 = vector.broadcast %127 : f32 to vector<8x128xf32>
    %129 = arith.addf %126, %128 : vector<8x128xf32>
    %cst_36 = arith.constant 0.000000e+00 : f32
    %130 = vector.broadcast %cst_36 : f32 to vector<8x128xf32>
    %131 = arith.maximumf %129, %130 : vector<8x128xf32>
    %c9_37 = arith.constant 9 : index
    %132 = memref.load %arg5[%c9_37] : memref<32xf32, #tpu.memory_space<smem>>
    %133 = vector.broadcast %132 : f32 to vector<8x128xf32>
    %134 = arith.mulf %131, %133 : vector<8x128xf32>
    %135 = arith.addf %87, %134 : vector<8x128xf32>
    %c10 = arith.constant 10 : index
    %136 = memref.load %arg3[%c10] : memref<32xf32, #tpu.memory_space<smem>>
    %137 = vector.broadcast %136 : f32 to vector<8x128xf32>
    %138 = arith.mulf %11, %137 : vector<8x128xf32>
    %c10_38 = arith.constant 10 : index
    %139 = memref.load %arg4[%c10_38] : memref<32xf32, #tpu.memory_space<smem>>
    %140 = vector.broadcast %139 : f32 to vector<8x128xf32>
    %141 = arith.addf %138, %140 : vector<8x128xf32>
    %cst_39 = arith.constant 0.000000e+00 : f32
    %142 = vector.broadcast %cst_39 : f32 to vector<8x128xf32>
    %143 = arith.maximumf %141, %142 : vector<8x128xf32>
    %c10_40 = arith.constant 10 : index
    %144 = memref.load %arg5[%c10_40] : memref<32xf32, #tpu.memory_space<smem>>
    %145 = vector.broadcast %144 : f32 to vector<8x128xf32>
    %146 = arith.mulf %143, %145 : vector<8x128xf32>
    %147 = arith.addf %99, %146 : vector<8x128xf32>
    %c11 = arith.constant 11 : index
    %148 = memref.load %arg3[%c11] : memref<32xf32, #tpu.memory_space<smem>>
    %149 = vector.broadcast %148 : f32 to vector<8x128xf32>
    %150 = arith.mulf %11, %149 : vector<8x128xf32>
    %c11_41 = arith.constant 11 : index
    %151 = memref.load %arg4[%c11_41] : memref<32xf32, #tpu.memory_space<smem>>
    %152 = vector.broadcast %151 : f32 to vector<8x128xf32>
    %153 = arith.addf %150, %152 : vector<8x128xf32>
    %cst_42 = arith.constant 0.000000e+00 : f32
    %154 = vector.broadcast %cst_42 : f32 to vector<8x128xf32>
    %155 = arith.maximumf %153, %154 : vector<8x128xf32>
    %c11_43 = arith.constant 11 : index
    %156 = memref.load %arg5[%c11_43] : memref<32xf32, #tpu.memory_space<smem>>
    %157 = vector.broadcast %156 : f32 to vector<8x128xf32>
    %158 = arith.mulf %155, %157 : vector<8x128xf32>
    %159 = arith.addf %111, %158 : vector<8x128xf32>
    %c12 = arith.constant 12 : index
    %160 = memref.load %arg3[%c12] : memref<32xf32, #tpu.memory_space<smem>>
    %161 = vector.broadcast %160 : f32 to vector<8x128xf32>
    %162 = arith.mulf %11, %161 : vector<8x128xf32>
    %c12_44 = arith.constant 12 : index
    %163 = memref.load %arg4[%c12_44] : memref<32xf32, #tpu.memory_space<smem>>
    %164 = vector.broadcast %163 : f32 to vector<8x128xf32>
    %165 = arith.addf %162, %164 : vector<8x128xf32>
    %cst_45 = arith.constant 0.000000e+00 : f32
    %166 = vector.broadcast %cst_45 : f32 to vector<8x128xf32>
    %167 = arith.maximumf %165, %166 : vector<8x128xf32>
    %c12_46 = arith.constant 12 : index
    %168 = memref.load %arg5[%c12_46] : memref<32xf32, #tpu.memory_space<smem>>
    %169 = vector.broadcast %168 : f32 to vector<8x128xf32>
    %170 = arith.mulf %167, %169 : vector<8x128xf32>
    %171 = arith.addf %123, %170 : vector<8x128xf32>
    %c13 = arith.constant 13 : index
    %172 = memref.load %arg3[%c13] : memref<32xf32, #tpu.memory_space<smem>>
    %173 = vector.broadcast %172 : f32 to vector<8x128xf32>
    %174 = arith.mulf %11, %173 : vector<8x128xf32>
    %c13_47 = arith.constant 13 : index
    %175 = memref.load %arg4[%c13_47] : memref<32xf32, #tpu.memory_space<smem>>
    %176 = vector.broadcast %175 : f32 to vector<8x128xf32>
    %177 = arith.addf %174, %176 : vector<8x128xf32>
    %cst_48 = arith.constant 0.000000e+00 : f32
    %178 = vector.broadcast %cst_48 : f32 to vector<8x128xf32>
    %179 = arith.maximumf %177, %178 : vector<8x128xf32>
    %c13_49 = arith.constant 13 : index
    %180 = memref.load %arg5[%c13_49] : memref<32xf32, #tpu.memory_space<smem>>
    %181 = vector.broadcast %180 : f32 to vector<8x128xf32>
    %182 = arith.mulf %179, %181 : vector<8x128xf32>
    %183 = arith.addf %135, %182 : vector<8x128xf32>
    %c14 = arith.constant 14 : index
    %184 = memref.load %arg3[%c14] : memref<32xf32, #tpu.memory_space<smem>>
    %185 = vector.broadcast %184 : f32 to vector<8x128xf32>
    %186 = arith.mulf %11, %185 : vector<8x128xf32>
    %c14_50 = arith.constant 14 : index
    %187 = memref.load %arg4[%c14_50] : memref<32xf32, #tpu.memory_space<smem>>
    %188 = vector.broadcast %187 : f32 to vector<8x128xf32>
    %189 = arith.addf %186, %188 : vector<8x128xf32>
    %cst_51 = arith.constant 0.000000e+00 : f32
    %190 = vector.broadcast %cst_51 : f32 to vector<8x128xf32>
    %191 = arith.maximumf %189, %190 : vector<8x128xf32>
    %c14_52 = arith.constant 14 : index
    %192 = memref.load %arg5[%c14_52] : memref<32xf32, #tpu.memory_space<smem>>
    %193 = vector.broadcast %192 : f32 to vector<8x128xf32>
    %194 = arith.mulf %191, %193 : vector<8x128xf32>
    %195 = arith.addf %147, %194 : vector<8x128xf32>
    %c15 = arith.constant 15 : index
    %196 = memref.load %arg3[%c15] : memref<32xf32, #tpu.memory_space<smem>>
    %197 = vector.broadcast %196 : f32 to vector<8x128xf32>
    %198 = arith.mulf %11, %197 : vector<8x128xf32>
    %c15_53 = arith.constant 15 : index
    %199 = memref.load %arg4[%c15_53] : memref<32xf32, #tpu.memory_space<smem>>
    %200 = vector.broadcast %199 : f32 to vector<8x128xf32>
    %201 = arith.addf %198, %200 : vector<8x128xf32>
    %cst_54 = arith.constant 0.000000e+00 : f32
    %202 = vector.broadcast %cst_54 : f32 to vector<8x128xf32>
    %203 = arith.maximumf %201, %202 : vector<8x128xf32>
    %c15_55 = arith.constant 15 : index
    %204 = memref.load %arg5[%c15_55] : memref<32xf32, #tpu.memory_space<smem>>
    %205 = vector.broadcast %204 : f32 to vector<8x128xf32>
    %206 = arith.mulf %203, %205 : vector<8x128xf32>
    %207 = arith.addf %159, %206 : vector<8x128xf32>
    %c16 = arith.constant 16 : index
    %208 = memref.load %arg3[%c16] : memref<32xf32, #tpu.memory_space<smem>>
    %209 = vector.broadcast %208 : f32 to vector<8x128xf32>
    %210 = arith.mulf %11, %209 : vector<8x128xf32>
    %c16_56 = arith.constant 16 : index
    %211 = memref.load %arg4[%c16_56] : memref<32xf32, #tpu.memory_space<smem>>
    %212 = vector.broadcast %211 : f32 to vector<8x128xf32>
    %213 = arith.addf %210, %212 : vector<8x128xf32>
    %cst_57 = arith.constant 0.000000e+00 : f32
    %214 = vector.broadcast %cst_57 : f32 to vector<8x128xf32>
    %215 = arith.maximumf %213, %214 : vector<8x128xf32>
    %c16_58 = arith.constant 16 : index
    %216 = memref.load %arg5[%c16_58] : memref<32xf32, #tpu.memory_space<smem>>
    %217 = vector.broadcast %216 : f32 to vector<8x128xf32>
    %218 = arith.mulf %215, %217 : vector<8x128xf32>
    %219 = arith.addf %171, %218 : vector<8x128xf32>
    %c17 = arith.constant 17 : index
    %220 = memref.load %arg3[%c17] : memref<32xf32, #tpu.memory_space<smem>>
    %221 = vector.broadcast %220 : f32 to vector<8x128xf32>
    %222 = arith.mulf %11, %221 : vector<8x128xf32>
    %c17_59 = arith.constant 17 : index
    %223 = memref.load %arg4[%c17_59] : memref<32xf32, #tpu.memory_space<smem>>
    %224 = vector.broadcast %223 : f32 to vector<8x128xf32>
    %225 = arith.addf %222, %224 : vector<8x128xf32>
    %cst_60 = arith.constant 0.000000e+00 : f32
    %226 = vector.broadcast %cst_60 : f32 to vector<8x128xf32>
    %227 = arith.maximumf %225, %226 : vector<8x128xf32>
    %c17_61 = arith.constant 17 : index
    %228 = memref.load %arg5[%c17_61] : memref<32xf32, #tpu.memory_space<smem>>
    %229 = vector.broadcast %228 : f32 to vector<8x128xf32>
    %230 = arith.mulf %227, %229 : vector<8x128xf32>
    %231 = arith.addf %183, %230 : vector<8x128xf32>
    %c18 = arith.constant 18 : index
    %232 = memref.load %arg3[%c18] : memref<32xf32, #tpu.memory_space<smem>>
    %233 = vector.broadcast %232 : f32 to vector<8x128xf32>
    %234 = arith.mulf %11, %233 : vector<8x128xf32>
    %c18_62 = arith.constant 18 : index
    %235 = memref.load %arg4[%c18_62] : memref<32xf32, #tpu.memory_space<smem>>
    %236 = vector.broadcast %235 : f32 to vector<8x128xf32>
    %237 = arith.addf %234, %236 : vector<8x128xf32>
    %cst_63 = arith.constant 0.000000e+00 : f32
    %238 = vector.broadcast %cst_63 : f32 to vector<8x128xf32>
    %239 = arith.maximumf %237, %238 : vector<8x128xf32>
    %c18_64 = arith.constant 18 : index
    %240 = memref.load %arg5[%c18_64] : memref<32xf32, #tpu.memory_space<smem>>
    %241 = vector.broadcast %240 : f32 to vector<8x128xf32>
    %242 = arith.mulf %239, %241 : vector<8x128xf32>
    %243 = arith.addf %195, %242 : vector<8x128xf32>
    %c19 = arith.constant 19 : index
    %244 = memref.load %arg3[%c19] : memref<32xf32, #tpu.memory_space<smem>>
    %245 = vector.broadcast %244 : f32 to vector<8x128xf32>
    %246 = arith.mulf %11, %245 : vector<8x128xf32>
    %c19_65 = arith.constant 19 : index
    %247 = memref.load %arg4[%c19_65] : memref<32xf32, #tpu.memory_space<smem>>
    %248 = vector.broadcast %247 : f32 to vector<8x128xf32>
    %249 = arith.addf %246, %248 : vector<8x128xf32>
    %cst_66 = arith.constant 0.000000e+00 : f32
    %250 = vector.broadcast %cst_66 : f32 to vector<8x128xf32>
    %251 = arith.maximumf %249, %250 : vector<8x128xf32>
    %c19_67 = arith.constant 19 : index
    %252 = memref.load %arg5[%c19_67] : memref<32xf32, #tpu.memory_space<smem>>
    %253 = vector.broadcast %252 : f32 to vector<8x128xf32>
    %254 = arith.mulf %251, %253 : vector<8x128xf32>
    %255 = arith.addf %207, %254 : vector<8x128xf32>
    %c20 = arith.constant 20 : index
    %256 = memref.load %arg3[%c20] : memref<32xf32, #tpu.memory_space<smem>>
    %257 = vector.broadcast %256 : f32 to vector<8x128xf32>
    %258 = arith.mulf %11, %257 : vector<8x128xf32>
    %c20_68 = arith.constant 20 : index
    %259 = memref.load %arg4[%c20_68] : memref<32xf32, #tpu.memory_space<smem>>
    %260 = vector.broadcast %259 : f32 to vector<8x128xf32>
    %261 = arith.addf %258, %260 : vector<8x128xf32>
    %cst_69 = arith.constant 0.000000e+00 : f32
    %262 = vector.broadcast %cst_69 : f32 to vector<8x128xf32>
    %263 = arith.maximumf %261, %262 : vector<8x128xf32>
    %c20_70 = arith.constant 20 : index
    %264 = memref.load %arg5[%c20_70] : memref<32xf32, #tpu.memory_space<smem>>
    %265 = vector.broadcast %264 : f32 to vector<8x128xf32>
    %266 = arith.mulf %263, %265 : vector<8x128xf32>
    %267 = arith.addf %219, %266 : vector<8x128xf32>
    %c21 = arith.constant 21 : index
    %268 = memref.load %arg3[%c21] : memref<32xf32, #tpu.memory_space<smem>>
    %269 = vector.broadcast %268 : f32 to vector<8x128xf32>
    %270 = arith.mulf %11, %269 : vector<8x128xf32>
    %c21_71 = arith.constant 21 : index
    %271 = memref.load %arg4[%c21_71] : memref<32xf32, #tpu.memory_space<smem>>
    %272 = vector.broadcast %271 : f32 to vector<8x128xf32>
    %273 = arith.addf %270, %272 : vector<8x128xf32>
    %cst_72 = arith.constant 0.000000e+00 : f32
    %274 = vector.broadcast %cst_72 : f32 to vector<8x128xf32>
    %275 = arith.maximumf %273, %274 : vector<8x128xf32>
    %c21_73 = arith.constant 21 : index
    %276 = memref.load %arg5[%c21_73] : memref<32xf32, #tpu.memory_space<smem>>
    %277 = vector.broadcast %276 : f32 to vector<8x128xf32>
    %278 = arith.mulf %275, %277 : vector<8x128xf32>
    %279 = arith.addf %231, %278 : vector<8x128xf32>
    %c22 = arith.constant 22 : index
    %280 = memref.load %arg3[%c22] : memref<32xf32, #tpu.memory_space<smem>>
    %281 = vector.broadcast %280 : f32 to vector<8x128xf32>
    %282 = arith.mulf %11, %281 : vector<8x128xf32>
    %c22_74 = arith.constant 22 : index
    %283 = memref.load %arg4[%c22_74] : memref<32xf32, #tpu.memory_space<smem>>
    %284 = vector.broadcast %283 : f32 to vector<8x128xf32>
    %285 = arith.addf %282, %284 : vector<8x128xf32>
    %cst_75 = arith.constant 0.000000e+00 : f32
    %286 = vector.broadcast %cst_75 : f32 to vector<8x128xf32>
    %287 = arith.maximumf %285, %286 : vector<8x128xf32>
    %c22_76 = arith.constant 22 : index
    %288 = memref.load %arg5[%c22_76] : memref<32xf32, #tpu.memory_space<smem>>
    %289 = vector.broadcast %288 : f32 to vector<8x128xf32>
    %290 = arith.mulf %287, %289 : vector<8x128xf32>
    %291 = arith.addf %243, %290 : vector<8x128xf32>
    %c23 = arith.constant 23 : index
    %292 = memref.load %arg3[%c23] : memref<32xf32, #tpu.memory_space<smem>>
    %293 = vector.broadcast %292 : f32 to vector<8x128xf32>
    %294 = arith.mulf %11, %293 : vector<8x128xf32>
    %c23_77 = arith.constant 23 : index
    %295 = memref.load %arg4[%c23_77] : memref<32xf32, #tpu.memory_space<smem>>
    %296 = vector.broadcast %295 : f32 to vector<8x128xf32>
    %297 = arith.addf %294, %296 : vector<8x128xf32>
    %cst_78 = arith.constant 0.000000e+00 : f32
    %298 = vector.broadcast %cst_78 : f32 to vector<8x128xf32>
    %299 = arith.maximumf %297, %298 : vector<8x128xf32>
    %c23_79 = arith.constant 23 : index
    %300 = memref.load %arg5[%c23_79] : memref<32xf32, #tpu.memory_space<smem>>
    %301 = vector.broadcast %300 : f32 to vector<8x128xf32>
    %302 = arith.mulf %299, %301 : vector<8x128xf32>
    %303 = arith.addf %255, %302 : vector<8x128xf32>
    %c24 = arith.constant 24 : index
    %304 = memref.load %arg3[%c24] : memref<32xf32, #tpu.memory_space<smem>>
    %305 = vector.broadcast %304 : f32 to vector<8x128xf32>
    %306 = arith.mulf %11, %305 : vector<8x128xf32>
    %c24_80 = arith.constant 24 : index
    %307 = memref.load %arg4[%c24_80] : memref<32xf32, #tpu.memory_space<smem>>
    %308 = vector.broadcast %307 : f32 to vector<8x128xf32>
    %309 = arith.addf %306, %308 : vector<8x128xf32>
    %cst_81 = arith.constant 0.000000e+00 : f32
    %310 = vector.broadcast %cst_81 : f32 to vector<8x128xf32>
    %311 = arith.maximumf %309, %310 : vector<8x128xf32>
    %c24_82 = arith.constant 24 : index
    %312 = memref.load %arg5[%c24_82] : memref<32xf32, #tpu.memory_space<smem>>
    %313 = vector.broadcast %312 : f32 to vector<8x128xf32>
    %314 = arith.mulf %311, %313 : vector<8x128xf32>
    %315 = arith.addf %267, %314 : vector<8x128xf32>
    %c25 = arith.constant 25 : index
    %316 = memref.load %arg3[%c25] : memref<32xf32, #tpu.memory_space<smem>>
    %317 = vector.broadcast %316 : f32 to vector<8x128xf32>
    %318 = arith.mulf %11, %317 : vector<8x128xf32>
    %c25_83 = arith.constant 25 : index
    %319 = memref.load %arg4[%c25_83] : memref<32xf32, #tpu.memory_space<smem>>
    %320 = vector.broadcast %319 : f32 to vector<8x128xf32>
    %321 = arith.addf %318, %320 : vector<8x128xf32>
    %cst_84 = arith.constant 0.000000e+00 : f32
    %322 = vector.broadcast %cst_84 : f32 to vector<8x128xf32>
    %323 = arith.maximumf %321, %322 : vector<8x128xf32>
    %c25_85 = arith.constant 25 : index
    %324 = memref.load %arg5[%c25_85] : memref<32xf32, #tpu.memory_space<smem>>
    %325 = vector.broadcast %324 : f32 to vector<8x128xf32>
    %326 = arith.mulf %323, %325 : vector<8x128xf32>
    %327 = arith.addf %279, %326 : vector<8x128xf32>
    %c26 = arith.constant 26 : index
    %328 = memref.load %arg3[%c26] : memref<32xf32, #tpu.memory_space<smem>>
    %329 = vector.broadcast %328 : f32 to vector<8x128xf32>
    %330 = arith.mulf %11, %329 : vector<8x128xf32>
    %c26_86 = arith.constant 26 : index
    %331 = memref.load %arg4[%c26_86] : memref<32xf32, #tpu.memory_space<smem>>
    %332 = vector.broadcast %331 : f32 to vector<8x128xf32>
    %333 = arith.addf %330, %332 : vector<8x128xf32>
    %cst_87 = arith.constant 0.000000e+00 : f32
    %334 = vector.broadcast %cst_87 : f32 to vector<8x128xf32>
    %335 = arith.maximumf %333, %334 : vector<8x128xf32>
    %c26_88 = arith.constant 26 : index
    %336 = memref.load %arg5[%c26_88] : memref<32xf32, #tpu.memory_space<smem>>
    %337 = vector.broadcast %336 : f32 to vector<8x128xf32>
    %338 = arith.mulf %335, %337 : vector<8x128xf32>
    %339 = arith.addf %291, %338 : vector<8x128xf32>
    %c27 = arith.constant 27 : index
    %340 = memref.load %arg3[%c27] : memref<32xf32, #tpu.memory_space<smem>>
    %341 = vector.broadcast %340 : f32 to vector<8x128xf32>
    %342 = arith.mulf %11, %341 : vector<8x128xf32>
    %c27_89 = arith.constant 27 : index
    %343 = memref.load %arg4[%c27_89] : memref<32xf32, #tpu.memory_space<smem>>
    %344 = vector.broadcast %343 : f32 to vector<8x128xf32>
    %345 = arith.addf %342, %344 : vector<8x128xf32>
    %cst_90 = arith.constant 0.000000e+00 : f32
    %346 = vector.broadcast %cst_90 : f32 to vector<8x128xf32>
    %347 = arith.maximumf %345, %346 : vector<8x128xf32>
    %c27_91 = arith.constant 27 : index
    %348 = memref.load %arg5[%c27_91] : memref<32xf32, #tpu.memory_space<smem>>
    %349 = vector.broadcast %348 : f32 to vector<8x128xf32>
    %350 = arith.mulf %347, %349 : vector<8x128xf32>
    %351 = arith.addf %303, %350 : vector<8x128xf32>
    %c28 = arith.constant 28 : index
    %352 = memref.load %arg3[%c28] : memref<32xf32, #tpu.memory_space<smem>>
    %353 = vector.broadcast %352 : f32 to vector<8x128xf32>
    %354 = arith.mulf %11, %353 : vector<8x128xf32>
    %c28_92 = arith.constant 28 : index
    %355 = memref.load %arg4[%c28_92] : memref<32xf32, #tpu.memory_space<smem>>
    %356 = vector.broadcast %355 : f32 to vector<8x128xf32>
    %357 = arith.addf %354, %356 : vector<8x128xf32>
    %cst_93 = arith.constant 0.000000e+00 : f32
    %358 = vector.broadcast %cst_93 : f32 to vector<8x128xf32>
    %359 = arith.maximumf %357, %358 : vector<8x128xf32>
    %c28_94 = arith.constant 28 : index
    %360 = memref.load %arg5[%c28_94] : memref<32xf32, #tpu.memory_space<smem>>
    %361 = vector.broadcast %360 : f32 to vector<8x128xf32>
    %362 = arith.mulf %359, %361 : vector<8x128xf32>
    %363 = arith.addf %315, %362 : vector<8x128xf32>
    %c29 = arith.constant 29 : index
    %364 = memref.load %arg3[%c29] : memref<32xf32, #tpu.memory_space<smem>>
    %365 = vector.broadcast %364 : f32 to vector<8x128xf32>
    %366 = arith.mulf %11, %365 : vector<8x128xf32>
    %c29_95 = arith.constant 29 : index
    %367 = memref.load %arg4[%c29_95] : memref<32xf32, #tpu.memory_space<smem>>
    %368 = vector.broadcast %367 : f32 to vector<8x128xf32>
    %369 = arith.addf %366, %368 : vector<8x128xf32>
    %cst_96 = arith.constant 0.000000e+00 : f32
    %370 = vector.broadcast %cst_96 : f32 to vector<8x128xf32>
    %371 = arith.maximumf %369, %370 : vector<8x128xf32>
    %c29_97 = arith.constant 29 : index
    %372 = memref.load %arg5[%c29_97] : memref<32xf32, #tpu.memory_space<smem>>
    %373 = vector.broadcast %372 : f32 to vector<8x128xf32>
    %374 = arith.mulf %371, %373 : vector<8x128xf32>
    %375 = arith.addf %327, %374 : vector<8x128xf32>
    %c30 = arith.constant 30 : index
    %376 = memref.load %arg3[%c30] : memref<32xf32, #tpu.memory_space<smem>>
    %377 = vector.broadcast %376 : f32 to vector<8x128xf32>
    %378 = arith.mulf %11, %377 : vector<8x128xf32>
    %c30_98 = arith.constant 30 : index
    %379 = memref.load %arg4[%c30_98] : memref<32xf32, #tpu.memory_space<smem>>
    %380 = vector.broadcast %379 : f32 to vector<8x128xf32>
    %381 = arith.addf %378, %380 : vector<8x128xf32>
    %cst_99 = arith.constant 0.000000e+00 : f32
    %382 = vector.broadcast %cst_99 : f32 to vector<8x128xf32>
    %383 = arith.maximumf %381, %382 : vector<8x128xf32>
    %c30_100 = arith.constant 30 : index
    %384 = memref.load %arg5[%c30_100] : memref<32xf32, #tpu.memory_space<smem>>
    %385 = vector.broadcast %384 : f32 to vector<8x128xf32>
    %386 = arith.mulf %383, %385 : vector<8x128xf32>
    %387 = arith.addf %339, %386 : vector<8x128xf32>
    %c31 = arith.constant 31 : index
    %388 = memref.load %arg3[%c31] : memref<32xf32, #tpu.memory_space<smem>>
    %389 = vector.broadcast %388 : f32 to vector<8x128xf32>
    %390 = arith.mulf %11, %389 : vector<8x128xf32>
    %c31_101 = arith.constant 31 : index
    %391 = memref.load %arg4[%c31_101] : memref<32xf32, #tpu.memory_space<smem>>
    %392 = vector.broadcast %391 : f32 to vector<8x128xf32>
    %393 = arith.addf %390, %392 : vector<8x128xf32>
    %cst_102 = arith.constant 0.000000e+00 : f32
    %394 = vector.broadcast %cst_102 : f32 to vector<8x128xf32>
    %395 = arith.maximumf %393, %394 : vector<8x128xf32>
    %c31_103 = arith.constant 31 : index
    %396 = memref.load %arg5[%c31_103] : memref<32xf32, #tpu.memory_space<smem>>
    %397 = vector.broadcast %396 : f32 to vector<8x128xf32>
    %398 = arith.mulf %395, %397 : vector<8x128xf32>
    %399 = arith.addf %351, %398 : vector<8x128xf32>
    %400 = arith.addf %363, %375 : vector<8x128xf32>
    %401 = arith.addf %400, %387 : vector<8x128xf32>
    %402 = arith.addf %401, %399 : vector<8x128xf32>
    %c0_104 = arith.constant 0 : index
    %403 = memref.load %arg6[%c0_104] : memref<1xf32, #tpu.memory_space<smem>>
    %404 = vector.broadcast %403 : f32 to vector<8x128xf32>
    %405 = arith.addf %402, %404 : vector<8x128xf32>
    %cst_105 = arith.constant 9.99999974E-6 : f32
    %406 = vector.broadcast %cst_105 : f32 to vector<8x128xf32>
    %407 = arith.addf %11, %406 : vector<8x128xf32>
    %408 = tpu.reciprocal %407 {approx = true} : vector<8x128xf32> -> vector<8x128xf32>
    %409 = arith.mulf %407, %408 : vector<8x128xf32>
    %cst_106 = arith.constant 2.000000e+00 : f32
    %410 = vector.broadcast %cst_106 : f32 to vector<8x128xf32>
    %411 = arith.subf %410, %409 : vector<8x128xf32>
    %412 = arith.mulf %408, %411 : vector<8x128xf32>
    %413 = arith.mulf %407, %412 : vector<8x128xf32>
    %cst_107 = arith.constant 2.000000e+00 : f32
    %414 = vector.broadcast %cst_107 : f32 to vector<8x128xf32>
    %415 = arith.subf %414, %413 : vector<8x128xf32>
    %416 = arith.mulf %412, %415 : vector<8x128xf32>
    %417 = arith.mulf %405, %416 : vector<8x128xf32>
    %418 = arith.mulf %417, %1 : vector<8x128xf32>
    %419 = vector.shape_cast %418 : vector<8x128xf32> to vector<1x8x128xf32>
    %420 = vector.broadcast %419 : vector<1x8x128xf32> to vector<3x8x128xf32>
    %421 = arith.mulf %0, %420 : vector<3x8x128xf32>
    %cst_108 = arith.constant dense<0.000000e+00> : vector<8xf32>
    %422 = vector.multi_reduction <add>, %1, %cst_108 [1] : vector<8x128xf32> to vector<8xf32>
    %423 = vector.shape_cast %422 : vector<8xf32> to vector<8x1xf32>
    %424 = tpu.reciprocal %423 {approx = true} : vector<8x1xf32> -> vector<8x1xf32>
    %425 = arith.mulf %423, %424 : vector<8x1xf32>
    %cst_109 = arith.constant 2.000000e+00 : f32
    %426 = vector.broadcast %cst_109 : f32 to vector<8x1xf32>
    %427 = arith.subf %426, %425 : vector<8x1xf32>
    %428 = arith.mulf %424, %427 : vector<8x1xf32>
    %429 = arith.mulf %423, %428 : vector<8x1xf32>
    %cst_110 = arith.constant 2.000000e+00 : f32
    %430 = vector.broadcast %cst_110 : f32 to vector<8x1xf32>
    %431 = arith.subf %430, %429 : vector<8x1xf32>
    %432 = arith.mulf %428, %431 : vector<8x1xf32>
    %cst_111 = arith.constant dense<0.000000e+00> : vector<3x8xf32>
    %433 = vector.multi_reduction <add>, %421, %cst_111 [2] : vector<3x8x128xf32> to vector<3x8xf32>
    %434 = vector.shape_cast %433 : vector<3x8xf32> to vector<3x8x1xf32>
    %435 = vector.shape_cast %432 : vector<8x1xf32> to vector<1x8x1xf32>
    %436 = vector.broadcast %435 : vector<1x8x1xf32> to vector<3x8x1xf32>
    %437 = arith.mulf %434, %436 : vector<3x8x1xf32>
    %438 = vector.shape_cast %1 : vector<8x128xf32> to vector<1x8x128xf32>
    %439 = vector.broadcast %437 : vector<3x8x1xf32> to vector<3x8x128xf32>
    %440 = vector.broadcast %438 : vector<1x8x128xf32> to vector<3x8x128xf32>
    %441 = arith.mulf %439, %440 : vector<3x8x128xf32>
    %442 = arith.subf %421, %441 : vector<3x8x128xf32>
    %c0_112 = arith.constant 0 : index
    %c0_113 = arith.constant 0 : index
    %c0_114 = arith.constant 0 : index
    %443 = vector.load %arg7[%c0_112, %c0_113, %c0_114] : memref<3x8x128xf32, #tpu.memory_space<vmem>>, vector<3x8x128xf32>
    tpu.vector_store %arg7[%c0_112, %c0_113, %c0_114], %442 {strides = array<i32>} : memref<3x8x128xf32, #tpu.memory_space<vmem>>, vector<3x8x128xf32>,
    return
  }
  func.func @transform_0(%arg0: i32) -> (i32, i32, i32) {
    %c0_i32 = arith.constant 0 : i32
    %c0_i32_0 = arith.constant 0 : i32
    %c0_i32_1 = arith.constant 0 : i32
    return %c0_i32, %arg0, %c0_i32_0 : i32, i32, i32
  }
  func.func @transform_1(%arg0: i32) -> (i32, i32) {
    %c0_i32 = arith.constant 0 : i32
    %c0_i32_0 = arith.constant 0 : i32
    return %arg0, %c0_i32 : i32, i32
  }
  func.func @transform_2(%arg0: i32) -> i32 {
    %c0_i32 = arith.constant 0 : i32
    %c0_i32_0 = arith.constant 0 : i32
    return %c0_i32 : i32
  }
  func.func @transform_3(%arg0: i32) -> i32 {
    %c0_i32 = arith.constant 0 : i32
    %c0_i32_0 = arith.constant 0 : i32
    return %c0_i32 : i32
  }
  func.func @transform_4(%arg0: i32) -> i32 {
    %c0_i32 = arith.constant 0 : i32
    %c0_i32_0 = arith.constant 0 : i32
    return %c0_i32 : i32
  }
  func.func @transform_5(%arg0: i32) -> i32 {
    %c0_i32 = arith.constant 0 : i32
    %c0_i32_0 = arith.constant 0 : i32
    return %c0_i32 : i32
  }
  func.func @transform_6(%arg0: i32) -> (i32, i32, i32) {
    %c0_i32 = arith.constant 0 : i32
    %c0_i32_0 = arith.constant 0 : i32
    %c0_i32_1 = arith.constant 0 : i32
    return %c0_i32, %arg0, %c0_i32_0 : i32, i32, i32
  }
}

</mosaic_0001>

<llo_original>
// kernel: tpu_custom_call.1
$region0: #{tpu_custom_call.1}
  #allocation0 [shape = 'u32[]', space=smem, size = 0x4, offset = 0x4, fixed_abs, tag = 'smem constant byte address 0x4 - core index']
  #allocation1 [shape = 'u32[144,128]{1,0:T(1,128)}', space=vmem, size = 0x12000, scoped, tag = 'internal scratch']
  #allocation2 [shape = 'f32[1]{0:T(128)S(6)}', space=smem, size = 0x200, scoped, tag = 'scoped memory for tpu_custom_call.1']
  %s0 = inlined_call_operand.hbm [shape: f32[3,8,128], index: 0, kind: input, shape index: {}]
  %s1 = inlined_call_operand.hbm [shape: f32[8,128], index: 1, kind: input, shape index: {}]
  %s2 = inlined_call_operand.vmem [shape: f32[32], index: 2, kind: input, shape index: {}]
  %s3 = inlined_call_operand.vmem [shape: f32[32], index: 3, kind: input, shape index: {}]
  %s4 = inlined_call_operand.vmem [shape: f32[32], index: 4, kind: input, shape index: {}]
  %s5 = inlined_call_operand.<no memory space> [shape: f32[1], index: 5, kind: input, shape index: {}]
  %s6 = inlined_call_operand.hbm [shape: f32[3,8,128], index: 6, kind: output, shape index: {}]
  %s7 = sld [smem:[#allocation0]]
  $region54: #{tpu_custom_call.1} parent=0
    _
  %s9 = ssub.s32 1, %s7
  %s10 = scalar_select 0, %s9, %s7
  %11 = sst [smem:[#allocation2]] %s5
  $region1: #{tpu_custom_call.1} parent=0
    #allocation3 [shape = 'u8[12288]{0}', space=vmem, size = 0x3000, scoped, tag = 'input window, operand 0, single buffered']
    #allocation4 [shape = 's32[1]{0}', space=sflag, size = 0x4, scoped, tag = 'scoped memory for tpu_custom_call.1']
    #allocation5 [shape = 's32[1]{0}', space=sflag, size = 0x4, scoped, tag = 'scoped memory for tpu_custom_call.1']
    #allocation6 [shape = 's32[1]{0}', space=sflag, size = 0x4, scoped, tag = 'scoped memory for tpu_custom_call.1']
    #allocation7 [shape = 'u8[4096]{0}', space=vmem, size = 0x1000, scoped, tag = 'input window, operand 1, single buffered']
    #allocation8 [shape = 's32[1]{0}', space=sflag, size = 0x4, scoped, tag = 'scoped memory for tpu_custom_call.1']
    #allocation9 [shape = 'u8[512]{0}', space=smem, size = 0x200, scoped, tag = 'input window, operand 2, single buffered']
    #allocation10 [shape = 'u8[512]{0}', space=smem, size = 0x200, scoped, tag = 'input window, operand 3, single buffered']
    #allocation11 [shape = 's32[1]{0}', space=sflag, size = 0x4, scoped, tag = 'scoped memory for tpu_custom_call.1']
    #allocation12 [shape = 'u8[512]{0}', space=smem, size = 0x200, scoped, tag = 'input window, operand 4, single buffered']
    #allocation13 [shape = 'u8[12288]{0}', space=vmem, size = 0x3000, scoped, tag = 'output window, operand 0, single buffered']
    %12 = vsyncpa [#allocation4], 0
    %13 = vsyncpa [#allocation8], 0
    %14 = vsyncpa [#allocation6], 0
    %15 = vsyncpa [#allocation11], 0
    %16 = vsyncpa [#allocation5], 0
    // Predicated region
    $region2: #{tpu_custom_call.1} parent=1 // pred_check
      _
    $region3: #{tpu_custom_call.1} parent=1 // pred_check_branch
      %18 = sbr.rel (0) target = $region5
    $region4: #{tpu_custom_call.1} parent=1 // pred_region
      %s20 = ssub.s32 384, 384
      %21 = vsyncadd [#allocation4], %s20
      %s22 = sshll.u32 [#allocation3], 4
      %s23 = int_to_ptr.vmem [resolvable:$true] %s22
      %28 = dma.hbm_to_vmem [thread:$0]  %s0, 384, %s23, [#allocation4], 128, 128, 8
    $region5: #{tpu_custom_call.1} parent=1 // pred_fallthru
      _
    // Predicated region
    $region6: #{tpu_custom_call.1} parent=1 // pred_check
      _
    $region7: #{tpu_custom_call.1} parent=1 // pred_check_branch
      %30 = sbr.rel (0) target = $region9
    $region8: #{tpu_custom_call.1} parent=1 // pred_region
      %s32 = ssub.s32 128, 128
      %33 = vsyncadd [#allocation8], %s32
      %s35 = sshll.u32 [#allocation7], 4
      %s36 = int_to_ptr.vmem [resolvable:$true] %s35
      %38 = dma.hbm_to_vmem [thread:$0]  %s1, 128, %s36, [#allocation8]
    $region9: #{tpu_custom_call.1} parent=1 // pred_fallthru
      _
    // Predicated region
    $region10: #{tpu_custom_call.1} parent=1 // pred_check
      _
    $region11: #{tpu_custom_call.1} parent=1 // pred_check_branch
      %40 = sbr.rel (0) target = $region13
    $region12: #{tpu_custom_call.1} parent=1 // pred_region
      %s42 = ssub.s32 16, 16
      %43 = vsyncadd [#allocation6], %s42
      %s45 = sshll.u32 %s2, 4
      %s46 = int_to_ptr.vmem [resolvable:$true] %s45
      %48 = dma.vmem_to_smem %s46, 16, [#allocation9], [#allocation6]
    $region13: #{tpu_custom_call.1} parent=1 // pred_fallthru
      _
    // Predicated region
    $region14: #{tpu_custom_call.1} parent=1 // pred_check
      _
    $region15: #{tpu_custom_call.1} parent=1 // pred_check_branch
      %50 = sbr.rel (0) target = $region17
    $region16: #{tpu_custom_call.1} parent=1 // pred_region
      %s52 = ssub.s32 16, 16
      %53 = vsyncadd [#allocation11], %s52
      %s55 = sshll.u32 %s3, 4
      %s56 = int_to_ptr.vmem [resolvable:$true] %s55
      %58 = dma.vmem_to_smem %s56, 16, [#allocation10], [#allocation11]
    $region17: #{tpu_custom_call.1} parent=1 // pred_fallthru
      _
    // Predicated region
    $region18: #{tpu_custom_call.1} parent=1 // pred_check
      _
    $region19: #{tpu_custom_call.1} parent=1 // pred_check_branch
      %60 = sbr.rel (0) target = $region21
    $region20: #{tpu_custom_call.1} parent=1 // pred_region
      %s62 = ssub.s32 16, 16
      %63 = vsyncadd [#allocation11], %s62
      %s65 = sshll.u32 %s4, 4
      %s66 = int_to_ptr.vmem [resolvable:$true] %s65
      %68 = dma.vmem_to_smem %s66, 16, [#allocation12], [#allocation11]
    $region21: #{tpu_custom_call.1} parent=1 // pred_fallthru
      _
    // Predicated region
    $region22: #{tpu_custom_call.1} parent=1 // pred_check
      _
    $region23: #{tpu_custom_call.1} parent=1 // pred_check_branch
      %70 = sbr.rel (0) target = $region25
    $region24: #{tpu_custom_call.1} parent=1 // pred_region
      _
    $region25: #{tpu_custom_call.1} parent=1 // pred_fallthru
      _
    // Predicated region
    $region26: #{tpu_custom_call.1} parent=1 // pred_check
      _
    $region27: #{tpu_custom_call.1} parent=1 // pred_check_branch
      %72 = sbr.rel (0) target = $region29
    $region28: #{tpu_custom_call.1} parent=1 // pred_region
      %73 = dma.done [#allocation4], 384
    $region29: #{tpu_custom_call.1} parent=1 // pred_fallthru
      _
    // Predicated region
    $region30: #{tpu_custom_call.1} parent=1 // pred_check
      _
    $region31: #{tpu_custom_call.1} parent=1 // pred_check_branch
      %75 = sbr.rel (0) target = $region33
    $region32: #{tpu_custom_call.1} parent=1 // pred_region
      %76 = dma.done [#allocation8], 128
    $region33: #{tpu_custom_call.1} parent=1 // pred_fallthru
      _
    // Predicated region
    $region34: #{tpu_custom_call.1} parent=1 // pred_check
      _
    $region35: #{tpu_custom_call.1} parent=1 // pred_check_branch
      %78 = sbr.rel (0) target = $region37
    $region36: #{tpu_custom_call.1} parent=1 // pred_region
      %79 = dma.done [#allocation6], 16
    $region37: #{tpu_custom_call.1} parent=1 // pred_fallthru
      _
    // Predicated region
    $region38: #{tpu_custom_call.1} parent=1 // pred_check
      _
    $region39: #{tpu_custom_call.1} parent=1 // pred_check_branch
      %81 = sbr.rel (0) target = $region41
    $region40: #{tpu_custom_call.1} parent=1 // pred_region
      %82 = dma.done [#allocation11], 16
    $region41: #{tpu_custom_call.1} parent=1 // pred_fallthru
      _
    // Predicated region
    $region42: #{tpu_custom_call.1} parent=1 // pred_check
      _
    $region43: #{tpu_custom_call.1} parent=1 // pred_check_branch
      %84 = sbr.rel (0) target = $region45
    $region44: #{tpu_custom_call.1} parent=1 // pred_region
      %85 = dma.done [#allocation11], 16
    $region45: #{tpu_custom_call.1} parent=1 // pred_fallthru
      _
    %86 = sfence
    %v87 = vld [vmem:[#allocation3] sm:$0xff]
    %v88 = vld [vmem:[#allocation3 + $0x8] sm:$0xff]
    %v89 = vld [vmem:[#allocation3 + $0x10] sm:$0xff]
    %v90 = vld [vmem:[#allocation7] sm:$0xff]
    %v91 = vmul.f32 %v87, %v87
    %v92 = vmul.f32 %v88, %v88
    %v93 = vmul.f32 %v89, %v89
    %v94 = vadd.f32 %v91, %v92
    %v95 = vadd.f32 %v94, %v93
    %v96 = vrsqrt.pop %v95
    %v97 = vmul.f32 %v95, %v96
    %vm98 = vcmp.eq.f32.partialorder %v95, inf
    %v99 = vsel %vm98, %v95, %v97
    %vm100 = vcmp.eq.f32.partialorder %v95, 0.0
    %v101 = vand.u32 %v95, 2147483648
    %v102 = vsel %vm100, %v101, %v99
    %s103 = sld [smem:[#allocation9]]
    %v104 = vstv %s103
    %v105 = vmul.f32 %v102, %v104
    %s106 = sld [smem:[#allocation10]]
    %v107 = vstv %s106
    %v108 = vadd.f32 %v105, %v107
    %v109 = vmax.f32 %v108, 0.0
    %s110 = sld [smem:[#allocation12]]
    %v111 = vstv %s110
    %v112 = vmul.f32 %v109, %v111
    %v113 = vadd.f32 %v112, 0.0
    %s114 = sld [smem:[#allocation9 + $0x1]]
    %v115 = vstv %s114
    %v116 = vmul.f32 %v102, %v115
    %s117 = sld [smem:[#allocation10 + $0x1]]
    %v118 = vstv %s117
    %v119 = vadd.f32 %v116, %v118
    %v120 = vmax.f32 %v119, 0.0
    %s121 = sld [smem:[#allocation12 + $0x1]]
    %v122 = vstv %s121
    %v123 = vmul.f32 %v120, %v122
    %v124 = vadd.f32 %v123, 0.0
    %s125 = sld [smem:[#allocation9 + $0x2]]
    %v126 = vstv %s125
    %v127 = vmul.f32 %v102, %v126
    %s128 = sld [smem:[#allocation10 + $0x2]]
    %v129 = vstv %s128
    %v130 = vadd.f32 %v127, %v129
    %v131 = vmax.f32 %v130, 0.0
    %s132 = sld [smem:[#allocation12 + $0x2]]
    %v133 = vstv %s132
    %v134 = vmul.f32 %v131, %v133
    %v135 = vadd.f32 %v134, 0.0
    %s136 = sld [smem:[#allocation9 + $0x3]]
    %v137 = vstv %s136
    %v138 = vmul.f32 %v102, %v137
    %s139 = sld [smem:[#allocation10 + $0x3]]
    %v140 = vstv %s139
    %v141 = vadd.f32 %v138, %v140
    %v142 = vmax.f32 %v141, 0.0
    %s143 = sld [smem:[#allocation12 + $0x3]]
    %v144 = vstv %s143
    %v145 = vmul.f32 %v142, %v144
    %v146 = vadd.f32 %v145, 0.0
    %s147 = sld [smem:[#allocation9 + $0x4]]
    %v148 = vstv %s147
    %v149 = vmul.f32 %v102, %v148
    %s150 = sld [smem:[#allocation10 + $0x4]]
    %v151 = vstv %s150
    %v152 = vadd.f32 %v149, %v151
    %v153 = vmax.f32 %v152, 0.0
    %s154 = sld [smem:[#allocation12 + $0x4]]
    %v155 = vstv %s154
    %v156 = vmul.f32 %v153, %v155
    %v157 = vadd.f32 %v113, %v156
    %s158 = sld [smem:[#allocation9 + $0x5]]
    %v159 = vstv %s158
    %v160 = vmul.f32 %v102, %v159
    %s161 = sld [smem:[#allocation10 + $0x5]]
    %v162 = vstv %s161
    %v163 = vadd.f32 %v160, %v162
    %v164 = vmax.f32 %v163, 0.0
    %s165 = sld [smem:[#allocation12 + $0x5]]
    %v166 = vstv %s165
    %v167 = vmul.f32 %v164, %v166
    %v168 = vadd.f32 %v124, %v167
    %s169 = sld [smem:[#allocation9 + $0x6]]
    %v170 = vstv %s169
    %v171 = vmul.f32 %v102, %v170
    %s172 = sld [smem:[#allocation10 + $0x6]]
    %v173 = vstv %s172
    %v174 = vadd.f32 %v171, %v173
    %v175 = vmax.f32 %v174, 0.0
    %s176 = sld [smem:[#allocation12 + $0x6]]
    %v177 = vstv %s176
    %v178 = vmul.f32 %v175, %v177
    %v179 = vadd.f32 %v135, %v178
    %s180 = sld [smem:[#allocation9 + $0x7]]
    %v181 = vstv %s180
    %v182 = vmul.f32 %v102, %v181
    %s183 = sld [smem:[#allocation10 + $0x7]]
    %v184 = vstv %s183
    %v185 = vadd.f32 %v182, %v184
    %v186 = vmax.f32 %v185, 0.0
    %s187 = sld [smem:[#allocation12 + $0x7]]
    %v188 = vstv %s187
    %v189 = vmul.f32 %v186, %v188
    %v190 = vadd.f32 %v146, %v189
    %s191 = sld [smem:[#allocation9 + $0x8]]
    %v192 = vstv %s191
    %v193 = vmul.f32 %v102, %v192
    %s194 = sld [smem:[#allocation10 + $0x8]]
    %v195 = vstv %s194
    %v196 = vadd.f32 %v193, %v195
    %v197 = vmax.f32 %v196, 0.0
    %s198 = sld [smem:[#allocation12 + $0x8]]
    %v199 = vstv %s198
    %v200 = vmul.f32 %v197, %v199
    %v201 = vadd.f32 %v157, %v200
    %s202 = sld [smem:[#allocation9 + $0x9]]
    %v203 = vstv %s202
    %v204 = vmul.f32 %v102, %v203
    %s205 = sld [smem:[#allocation10 + $0x9]]
    %v206 = vstv %s205
    %v207 = vadd.f32 %v204, %v206
    %v208 = vmax.f32 %v207, 0.0
    %s209 = sld [smem:[#allocation12 + $0x9]]
    %v210 = vstv %s209
    %v211 = vmul.f32 %v208, %v210
    %v212 = vadd.f32 %v168, %v211
    %s213 = sld [smem:[#allocation9 + $0xa]]
    %v214 = vstv %s213
    %v215 = vmul.f32 %v102, %v214
    %s216 = sld [smem:[#allocation10 + $0xa]]
    %v217 = vstv %s216
    %v218 = vadd.f32 %v215, %v217
    %v219 = vmax.f32 %v218, 0.0
    %s220 = sld [smem:[#allocation12 + $0xa]]
    %v221 = vstv %s220
    %v222 = vmul.f32 %v219, %v221
    %v223 = vadd.f32 %v179, %v222
    %s224 = sld [smem:[#allocation9 + $0xb]]
    %v225 = vstv %s224
    %v226 = vmul.f32 %v102, %v225
    %s227 = sld [smem:[#allocation10 + $0xb]]
    %v228 = vstv %s227
    %v229 = vadd.f32 %v226, %v228
    %v230 = vmax.f32 %v229, 0.0
    %s231 = sld [smem:[#allocation12 + $0xb]]
    %v232 = vstv %s231
    %v233 = vmul.f32 %v230, %v232
    %v234 = vadd.f32 %v190, %v233
    %s235 = sld [smem:[#allocation9 + $0xc]]
    %v236 = vstv %s235
    %v237 = vmul.f32 %v102, %v236
    %s238 = sld [smem:[#allocation10 + $0xc]]
    %v239 = vstv %s238
    %v240 = vadd.f32 %v237, %v239
    %v241 = vmax.f32 %v240, 0.0
    %s242 = sld [smem:[#allocation12 + $0xc]]
    %v243 = vstv %s242
    %v244 = vmul.f32 %v241, %v243
    %v245 = vadd.f32 %v201, %v244
    %s246 = sld [smem:[#allocation9 + $0xd]]
    %v247 = vstv %s246
    %v248 = vmul.f32 %v102, %v247
    %s249 = sld [smem:[#allocation10 + $0xd]]
    %v250 = vstv %s249
    %v251 = vadd.f32 %v248, %v250
    %v252 = vmax.f32 %v251, 0.0
    %s253 = sld [smem:[#allocation12 + $0xd]]
    %v254 = vstv %s253
    %v255 = vmul.f32 %v252, %v254
    %v256 = vadd.f32 %v212, %v255
    %s257 = sld [smem:[#allocation9 + $0xe]]
    %v258 = vstv %s257
    %v259 = vmul.f32 %v102, %v258
    %s260 = sld [smem:[#allocation10 + $0xe]]
    %v261 = vstv %s260
    %v262 = vadd.f32 %v259, %v261
    %v263 = vmax.f32 %v262, 0.0
    %s264 = sld [smem:[#allocation12 + $0xe]]
    %v265 = vstv %s264
    %v266 = vmul.f32 %v263, %v265
    %v267 = vadd.f32 %v223, %v266
    %s268 = sld [smem:[#allocation9 + $0xf]]
    %v269 = vstv %s268
    %v270 = vmul.f32 %v102, %v269
    %s271 = sld [smem:[#allocation10 + $0xf]]
    %v272 = vstv %s271
    %v273 = vadd.f32 %v270, %v272
    %v274 = vmax.f32 %v273, 0.0
    %s275 = sld [smem:[#allocation12 + $0xf]]
    %v276 = vstv %s275
    %v277 = vmul.f32 %v274, %v276
    %v278 = vadd.f32 %v234, %v277
    %s279 = sld [smem:[#allocation9 + $0x10]]
    %v280 = vstv %s279
    %v281 = vmul.f32 %v102, %v280
    %s282 = sld [smem:[#allocation10 + $0x10]]
    %v283 = vstv %s282
    %v284 = vadd.f32 %v281, %v283
    %v285 = vmax.f32 %v284, 0.0
    %s286 = sld [smem:[#allocation12 + $0x10]]
    %v287 = vstv %s286
    %v288 = vmul.f32 %v285, %v287
    %v289 = vadd.f32 %v245, %v288
    %s290 = sld [smem:[#allocation9 + $0x11]]
    %v291 = vstv %s290
    %v292 = vmul.f32 %v102, %v291
    %s293 = sld [smem:[#allocation10 + $0x11]]
    %v294 = vstv %s293
    %v295 = vadd.f32 %v292, %v294
    %v296 = vmax.f32 %v295, 0.0
    %s297 = sld [smem:[#allocation12 + $0x11]]
    %v298 = vstv %s297
    %v299 = vmul.f32 %v296, %v298
    %v300 = vadd.f32 %v256, %v299
    %s301 = sld [smem:[#allocation9 + $0x12]]
    %v302 = vstv %s301
    %v303 = vmul.f32 %v102, %v302
    %s304 = sld [smem:[#allocation10 + $0x12]]
    %v305 = vstv %s304
    %v306 = vadd.f32 %v303, %v305
    %v307 = vmax.f32 %v306, 0.0
    %s308 = sld [smem:[#allocation12 + $0x12]]
    %v309 = vstv %s308
    %v310 = vmul.f32 %v307, %v309
    %v311 = vadd.f32 %v267, %v310
    %s312 = sld [smem:[#allocation9 + $0x13]]
    %v313 = vstv %s312
    %v314 = vmul.f32 %v102, %v313
    %s315 = sld [smem:[#allocation10 + $0x13]]
    %v316 = vstv %s315
    %v317 = vadd.f32 %v314, %v316
    %v318 = vmax.f32 %v317, 0.0
    %s319 = sld [smem:[#allocation12 + $0x13]]
    %v320 = vstv %s319
    %v321 = vmul.f32 %v318, %v320
    %v322 = vadd.f32 %v278, %v321
    %s323 = sld [smem:[#allocation9 + $0x14]]
    %v324 = vstv %s323
    %v325 = vmul.f32 %v102, %v324
    %s326 = sld [smem:[#allocation10 + $0x14]]
    %v327 = vstv %s326
    %v328 = vadd.f32 %v325, %v327
    %v329 = vmax.f32 %v328, 0.0
    %s330 = sld [smem:[#allocation12 + $0x14]]
    %v331 = vstv %s330
    %v332 = vmul.f32 %v329, %v331
    %v333 = vadd.f32 %v289, %v332
    %s334 = sld [smem:[#allocation9 + $0x15]]
    %v335 = vstv %s334
    %v336 = vmul.f32 %v102, %v335
    %s337 = sld [smem:[#allocation10 + $0x15]]
    %v338 = vstv %s337
    %v339 = vadd.f32 %v336, %v338
    %v340 = vmax.f32 %v339, 0.0
    %s341 = sld [smem:[#allocation12 + $0x15]]
    %v342 = vstv %s341
    %v343 = vmul.f32 %v340, %v342
    %v344 = vadd.f32 %v300, %v343
    %s345 = sld [smem:[#allocation9 + $0x16]]
    %v346 = vstv %s345
    %v347 = vmul.f32 %v102, %v346
    %s348 = sld [smem:[#allocation10 + $0x16]]
    %v349 = vstv %s348
    %v350 = vadd.f32 %v347, %v349
    %v351 = vmax.f32 %v350, 0.0
    %s352 = sld [smem:[#allocation12 + $0x16]]
    %v353 = vstv %s352
    %v354 = vmul.f32 %v351, %v353
    %v355 = vadd.f32 %v311, %v354
    %s356 = sld [smem:[#allocation9 + $0x17]]
    %v357 = vstv %s356
    %v358 = vmul.f32 %v102, %v357
    %s359 = sld [smem:[#allocation10 + $0x17]]
    %v360 = vstv %s359
    %v361 = vadd.f32 %v358, %v360
    %v362 = vmax.f32 %v361, 0.0
    %s363 = sld [smem:[#allocation12 + $0x17]]
    %v364 = vstv %s363
    %v365 = vmul.f32 %v362, %v364
    %v366 = vadd.f32 %v322, %v365
    %s367 = sld [smem:[#allocation9 + $0x18]]
    %v368 = vstv %s367
    %v369 = vmul.f32 %v102, %v368
    %s370 = sld [smem:[#allocation10 + $0x18]]
    %v371 = vstv %s370
    %v372 = vadd.f32 %v369, %v371
    %v373 = vmax.f32 %v372, 0.0
    %s374 = sld [smem:[#allocation12 + $0x18]]
    %v375 = vstv %s374
    %v376 = vmul.f32 %v373, %v375
    %v377 = vadd.f32 %v333, %v376
    %s378 = sld [smem:[#allocation9 + $0x19]]
    %v379 = vstv %s378
    %v380 = vmul.f32 %v102, %v379
    %s381 = sld [smem:[#allocation10 + $0x19]]
    %v382 = vstv %s381
    %v383 = vadd.f32 %v380, %v382
    %v384 = vmax.f32 %v383, 0.0
    %s385 = sld [smem:[#allocation12 + $0x19]]
    %v386 = vstv %s385
    %v387 = vmul.f32 %v384, %v386
    %v388 = vadd.f32 %v344, %v387
    %s389 = sld [smem:[#allocation9 + $0x1a]]
    %v390 = vstv %s389
    %v391 = vmul.f32 %v102, %v390
    %s392 = sld [smem:[#allocation10 + $0x1a]]
    %v393 = vstv %s392
    %v394 = vadd.f32 %v391, %v393
    %v395 = vmax.f32 %v394, 0.0
    %s396 = sld [smem:[#allocation12 + $0x1a]]
    %v397 = vstv %s396
    %v398 = vmul.f32 %v395, %v397
    %v399 = vadd.f32 %v355, %v398
    %s400 = sld [smem:[#allocation9 + $0x1b]]
    %v401 = vstv %s400
    %v402 = vmul.f32 %v102, %v401
    %s403 = sld [smem:[#allocation10 + $0x1b]]
    %v404 = vstv %s403
    %v405 = vadd.f32 %v402, %v404
    %v406 = vmax.f32 %v405, 0.0
    %s407 = sld [smem:[#allocation12 + $0x1b]]
    %v408 = vstv %s407
    %v409 = vmul.f32 %v406, %v408
    %v410 = vadd.f32 %v366, %v409
    %s411 = sld [smem:[#allocation9 + $0x1c]]
    %v412 = vstv %s411
    %v413 = vmul.f32 %v102, %v412
    %s414 = sld [smem:[#allocation10 + $0x1c]]
    %v415 = vstv %s414
    %v416 = vadd.f32 %v413, %v415
    %v417 = vmax.f32 %v416, 0.0
    %s418 = sld [smem:[#allocation12 + $0x1c]]
    %v419 = vstv %s418
    %v420 = vmul.f32 %v417, %v419
    %v421 = vadd.f32 %v377, %v420
    %s422 = sld [smem:[#allocation9 + $0x1d]]
    %v423 = vstv %s422
    %v424 = vmul.f32 %v102, %v423
    %s425 = sld [smem:[#allocation10 + $0x1d]]
    %v426 = vstv %s425
    %v427 = vadd.f32 %v424, %v426
    %v428 = vmax.f32 %v427, 0.0
    %s429 = sld [smem:[#allocation12 + $0x1d]]
    %v430 = vstv %s429
    %v431 = vmul.f32 %v428, %v430
    %v432 = vadd.f32 %v388, %v431
    %s433 = sld [smem:[#allocation9 + $0x1e]]
    %v434 = vstv %s433
    %v435 = vmul.f32 %v102, %v434
    %s436 = sld [smem:[#allocation10 + $0x1e]]
    %v437 = vstv %s436
    %v438 = vadd.f32 %v435, %v437
    %v439 = vmax.f32 %v438, 0.0
    %s440 = sld [smem:[#allocation12 + $0x1e]]
    %v441 = vstv %s440
    %v442 = vmul.f32 %v439, %v441
    %v443 = vadd.f32 %v399, %v442
    %s444 = sld [smem:[#allocation9 + $0x1f]]
    %v445 = vstv %s444
    %v446 = vmul.f32 %v102, %v445
    %s447 = sld [smem:[#allocation10 + $0x1f]]
    %v448 = vstv %s447
    %v449 = vadd.f32 %v446, %v448
    %v450 = vmax.f32 %v449, 0.0
    %s451 = sld [smem:[#allocation12 + $0x1f]]
    %v452 = vstv %s451
    %v453 = vmul.f32 %v450, %v452
    %v454 = vadd.f32 %v410, %v453
    %v455 = vadd.f32 %v421, %v432
    %v456 = vadd.f32 %v455, %v443
    %v457 = vadd.f32 %v456, %v454
    %s458 = sld [smem:[#allocation2]]
    %v459 = vstv %s458
    %v460 = vadd.f32 %v457, %v459
    %v461 = vadd.f32 %v102, 1e-05
    %v462 = vrcp.pop %v461
    %v463 = vmul.f32 %v461, %v462
    %v464 = vsub.f32 2.0, %v463
    %v465 = vmul.f32 %v462, %v464
    %v466 = vmul.f32 %v461, %v465
    %v467 = vsub.f32 2.0, %v466
    %v468 = vmul.f32 %v465, %v467
    %v469 = vmul.f32 %v460, %v468
    %v470 = vmul.f32 %v469, %v90
    %v471 = vmul.f32 %v87, %v470
    %v472 = vmul.f32 %v88, %v470
    %v473 = vmul.f32 %v89, %v470
    %474 = vadd.xlane.f32.xlu0 %v90
    %v475 = vpop.xlane.xlu0 %474
    %v476 = vrcp.pop %v475
    %v477 = vmul.f32 %v475, %v476
    %v478 = vsub.f32 2.0, %v477
    %v479 = vmul.f32 %v476, %v478
    %v480 = vmul.f32 %v475, %v479
    %v481 = vsub.f32 2.0, %v480
    %v482 = vmul.f32 %v479, %v481
    %483 = vadd.xlane.f32.xlu0 %v471
    %v484 = vpop.xlane.xlu0 %483
    %485 = vadd.xlane.f32.xlu0 %v472
    %v486 = vpop.xlane.xlu0 %485
    %487 = vadd.xlane.f32.xlu0 %v473
    %v488 = vpop.xlane.xlu0 %487
    %v489 = vmul.f32 %v484, %v482
    %v490 = vmul.f32 %v486, %v482
    %v491 = vmul.f32 %v488, %v482
    %v492 = vmul.f32 %v489, %v90
    %v493 = vmul.f32 %v490, %v90
    %v494 = vmul.f32 %v491, %v90
    %v495 = vsub.f32 %v471, %v492
    %v496 = vsub.f32 %v472, %v493
    %v497 = vsub.f32 %v473, %v494
    %498 = vst [vmem:[#allocation13] sm:$0xff] %v495
    %499 = vst [vmem:[#allocation13 + $0x8] sm:$0xff] %v496
    %500 = vst [vmem:[#allocation13 + $0x10] sm:$0xff] %v497
    // Predicated region
    $region46: #{tpu_custom_call.1} parent=1 // pred_check
      _
    $region47: #{tpu_custom_call.1} parent=1 // pred_check_branch
      %502 = sbr.rel (0) target = $region49
    $region48: #{tpu_custom_call.1} parent=1 // pred_region
      %s504 = ssub.s32 384, 384
      %505 = vsyncadd [#allocation5], %s504
      %s506 = sshll.u32 [#allocation13], 4
      %s507 = int_to_ptr.vmem [resolvable:$true] %s506
      %512 = dma.vmem_to_hbm [thread:$0]  %s507, 384, %s6, [#allocation5], 128, 128, 8
    $region49: #{tpu_custom_call.1} parent=1 // pred_fallthru
      _
    // Predicated region
    $region50: #{tpu_custom_call.1} parent=1 // pred_check
      _
    $region51: #{tpu_custom_call.1} parent=1 // pred_check_branch
      %514 = sbr.rel (0) target = $region53
    $region52: #{tpu_custom_call.1} parent=1 // pred_region
      %515 = dma.done [#allocation5], 384
    $region53: #{tpu_custom_call.1} parent=1 // pred_fallthru
      _
    %516 = vsyncpa [#allocation4], 1
    %517 = vsyncpa [#allocation8], 1
    %518 = vsyncpa [#allocation5], 1
    %519 = vsyncpa [#allocation6], 1
    %520 = vsyncpa [#allocation11], 1

</llo_original>
